<compile_context>
chip_gen: v5e
topology: v5e:2x2
jax: 0.10.0
libtpu: 0.0.40
codegen_flags: <defaults>
</compile_context>

<pallas_src>
import functools
import math

import jax
import jax.numpy as jnp
from jax.experimental import pallas as pl
from jax.experimental.pallas import tpu as pltpu

LANE = 128  # TPU lane width: keep all feature dims a multiple of this.


def _round_up(x, m):
    return (x + m - 1) // m * m


def _pad2(x, rows, cols):
    r, c = x.shape
    return jnp.pad(x, ((0, rows - r), (0, cols - c)))


def _pad_params(weights, biases, f_in_pad):
    w_p, b_p = [], []
    prev = f_in_pad
    for w, b in zip(weights, biases):
        fo_pad = _round_up(w.shape[1], LANE)
        w_p.append(_pad2(w, prev, fo_pad))
        b_p.append(_pad2(b.reshape(1, -1), 1, fo_pad))
        prev = fo_pad
    return w_p, b_p


# ---------------------------------------------------------------------------
# Kernel 1: fused MLP head (all nn.Linear layers + ReLU, eval mode).
# ---------------------------------------------------------------------------
def _mlp_kernel(x_ref, *refs, n_layers):
    out_ref = refs[-1]
    h = x_ref[...]
    for l in range(n_layers):
        w = refs[2 * l][...]
        b = refs[2 * l + 1][...]
        h = jnp.dot(h, w, preferred_element_type=jnp.float32) + b
        if l < n_layers - 1:          # APPNP: last Linear has no activation
            h = jnp.maximum(h, 0.0)   # activation = ReLU
    out_ref[...] = h.astype(out_ref.dtype)


def mlp_forward(x, weights, biases, *, tm=256, out_dtype=jnp.float32):
    """x: (N, F_in) padded; weights[i]: (F_i, F_{i+1}) padded; biases[i]: (1, F_{i+1})."""
    n, f_in = x.shape
    f_out = weights[-1].shape[1]
    n_layers = len(weights)
    assert n % tm == 0

    in_specs = [pl.BlockSpec((tm, f_in), lambda i: (i, 0))]
    args = [x]
    resident_bytes = 0
    for w, b in zip(weights, biases):
        in_specs.append(pl.BlockSpec(w.shape, lambda i: (0, 0)))   # VMEM resident
        in_specs.append(pl.BlockSpec(b.shape, lambda i: (0, 0)))   # VMEM resident
        args += [w, b]
        resident_bytes += (w.size + b.size) * 4

    # Guard VMEM (v7x: 64 MiB physical / 32 MiB default scoped): resident weights
    # + double-buffered row blocks, with headroom.
    block_bytes = 2 * tm * f_in * 4 + 2 * tm * f_out * jnp.dtype(out_dtype).itemsize
    vmem_limit = int(min(max(2 * (resident_bytes + block_bytes), 32 << 20), 56 << 20))

    kernel = functools.partial(_mlp_kernel, n_layers=n_layers)
    return pl.pallas_call(
        kernel,
        out_shape=jax.ShapeDtypeStruct((n, f_out), out_dtype),
        grid=(n // tm,),
        in_specs=in_specs,
        out_specs=pl.BlockSpec((tm, f_out), lambda i: (i, 0)),
        compiler_params=pltpu.CompilerParams(
            dimension_semantics=("parallel",),
            vmem_limit_bytes=vmem_limit),
    )(*args)


# ---------------------------------------------------------------------------
# Kernel 2: fully fused propagation — all k hops in ONE pallas_call.
# Adjacency (bf16) and h0 stay VMEM-resident across the hop grid; the running
# h lives in persistent f32 VMEM scratch.  Used whenever the graph fits VMEM.
# ---------------------------------------------------------------------------
def _appnp_fused_kernel(adj_ref, h0_ref, out_ref, h_scr, *, alpha):
    hop = pl.program_id(0)

    @pl.when(hop == 0)
    def _():
        h_scr[...] = h0_ref[...].astype(jnp.float32)

    # bf16 x bf16 -> f32 accumulation on the MXU.
    ah = jnp.dot(adj_ref[...], h_scr[...].astype(adj_ref.dtype),
                 preferred_element_type=jnp.float32)
    h_new = (1.0 - alpha) * ah + alpha * h0_ref[...].astype(jnp.float32)
    h_scr[...] = h_new

    @pl.when(hop == pl.num_programs(0) - 1)
    def _():
        out_ref[...] = h_new.astype(out_ref.dtype)


def appnp_propagate_fused(adj_norm, h0, alpha, k):
    n = adj_norm.shape[0]
    f = h0.shape[1]
    adj_bytes = adj_norm.dtype.itemsize
    h_bytes = h0.dtype.itemsize
    flops = 2 * k * n * n * f
    # Adjacency / h0 are read from HBM once, output written once.
    bytes_accessed = n * n * adj_bytes + n * f * h_bytes + n * f * 4
    need = (2 * n * n * adj_bytes + 2 * n * f * h_bytes
            + n * f * 4 + 2 * n * f * 4)
    vmem_limit = int(min(max(need + (8 << 20), 32 << 20), 56 << 20))

    kernel = functools.partial(_appnp_fused_kernel, alpha=float(alpha))
    return pl.pallas_call(
        kernel,
        out_shape=jax.ShapeDtypeStruct((n, f), jnp.float32),
        grid=(k,),
        in_specs=[
            pl.BlockSpec((n, n), lambda i: (0, 0)),   # A_hat: resident across hops
            pl.BlockSpec((n, f), lambda i: (0, 0)),   # teleport h0: resident
        ],
        out_specs=pl.BlockSpec((n, f), lambda i: (0, 0)),
        scratch_shapes=[pltpu.VMEM((n, f), jnp.float32)],
        compiler_params=pltpu.CompilerParams(
            dimension_semantics=("arbitrary",),
            vmem_limit_bytes=vmem_limit),
        cost_estimate=pl.CostEstimate(flops=flops, transcendentals=0,
                                      bytes_accessed=bytes_accessed),
    )(adj_norm, h0)


# ---------------------------------------------------------------------------
# Kernel 3 (large-graph fallback): one APPNP power iteration, tiled SPMM.
#   h <- (1-alpha) * (A_hat @ h) + alpha * h0
# ---------------------------------------------------------------------------
def _appnp_step_kernel(adj_ref, h_ref, h0_ref, out_ref, acc_ref, *, alpha):
    kk = pl.program_id(1)

    @pl.when(kk == 0)
    def _():
        acc_ref[...] = jnp.zeros_like(acc_ref)

    acc_ref[...] += jnp.dot(adj_ref[...], h_ref[...],
                            preferred_element_type=jnp.float32)

    @pl.when(kk == pl.num_programs(1) - 1)
    def _():
        out_ref[...] = ((1.0 - alpha) * acc_ref[...]
                        + alpha * h0_ref[...].astype(jnp.float32)
                        ).astype(out_ref.dtype)


def appnp_step(adj_norm, h, h0, alpha, *, tm=256, tk=512):
    n = adj_norm.shape[0]
    f = h.shape[1]
    adj_bytes = adj_norm.dtype.itemsize
    h_bytes = h.dtype.itemsize
    n_m = n // tm
    flops = 2 * n * n * f
    bytes_accessed = (n * n * adj_bytes        # adjacency streamed once
                      + n_m * n * f * h_bytes  # h re-read per row block
                      + n * f * h_bytes        # h0
                      + n * f * h_bytes)       # output
    tile_bytes = (2 * tm * tk * adj_bytes + 2 * tk * f * h_bytes
                  + 2 * tm * f * h_bytes + 2 * tm * f * h_bytes + tm * f * 4)
    # v5e's scoped-VMEM default is only 16 MiB; raise it once tiles grow.
    vmem_limit = int(min(max(4 * tile_bytes, 32 << 20), 56 << 20))

    kernel = functools.partial(_appnp_step_kernel, alpha=float(alpha))
    return pl.pallas_call(
        kernel,
        out_shape=jax.ShapeDtypeStruct((n, f), h.dtype),
        grid=(n // tm, n // tk),
        in_specs=[
            pl.BlockSpec((tm, tk), lambda i, kk: (i, kk)),   # A_hat tile
            pl.BlockSpec((tk, f), lambda i, kk: (kk, 0)),    # current h (contraction)
            pl.BlockSpec((tm, f), lambda i, kk: (i, 0)),     # teleport h0
        ],
        out_specs=pl.BlockSpec((tm, f), lambda i, kk: (i, 0)),
        scratch_shapes=[pltpu.VMEM((tm, f), jnp.float32)],
        compiler_params=pltpu.CompilerParams(
            dimension_semantics=("parallel", "arbitrary"),
            vmem_limit_bytes=vmem_limit),
        cost_estimate=pl.CostEstimate(flops=flops, transcendentals=0,
                                      bytes_accessed=bytes_accessed),
    )(adj_norm, h, h0)


# ---------------------------------------------------------------------------
# Full APPNP forward (pads to TPU-friendly shapes, runs kernels, slices back).
# ---------------------------------------------------------------------------
def appnp_apply(feat, adj_norm, weights, biases, alpha, k, *,
                tm=256, tk=512, force_tiled=False,
                fused_vmem_budget=40 << 20):
    n, f_in = feat.shape
    n_classes = weights[-1].shape[1]
    f_in_pad = _round_up(f_in, LANE)
    f_out_pad = _round_up(n_classes, LANE)

    # --- choose propagation strategy --------------------------------------
    n_pad_fused = _round_up(n, 256)
    fused_need = (2 * n_pad_fused * n_pad_fused * 2            # bf16 adjacency (x2 margin)
                  + n_pad_fused * f_out_pad * (2 * 2 + 4 + 2 * 4))
    use_fused = (not force_tiled) and k > 0 and fused_need <= fused_vmem_budget

    if use_fused:
        n_pad = n_pad_fused
    else:
        assert tk % tm == 0, "pick tm | tk so padding waste is bounded by one tk tile"
        n_pad = _round_up(n, tk)

    feat_p = _pad2(feat, n_pad, f_in_pad)
    # Zero pad rows/cols => pad nodes are isolated (no leakage into real rows).
    # bf16 adjacency halves the dominant N^2 traffic; accumulation stays f32.
    adj_p = _pad2(adj_norm, n_pad, n_pad).astype(jnp.bfloat16)
    w_p, b_p = _pad_params(weights, biases, f_in_pad)

    mlp_tm = 256 if n_pad % 256 == 0 else 128
    # MLP emits bf16 so the propagation matmuls run in native MXU bf16 mode.
    h = mlp_forward(feat_p, w_p, b_p, tm=mlp_tm, out_dtype=jnp.bfloat16)

    if k == 0:
        out = h
    elif use_fused:
        out = appnp_propagate_fused(adj_p, h, alpha, k)
    else:
        h0 = h
        for _ in range(k):
            h = appnp_step(adj_p, h, h0, alpha, tm=tm, tk=tk)
        out = h
    return out[:n, :n_classes].astype(jnp.float32)


# ---------------------------------------------------------------------------
# Pure-JAX references (for sanity checks) and parameter init.
# ---------------------------------------------------------------------------
def mlp_reference(feat, weights, biases):
    hp = jax.lax.Precision.HIGHEST
    h = feat
    n_layers = len(weights)
    for l in range(n_layers):
        h = jnp.dot(h, weights[l], precision=hp) + biases[l]
        if l < n_layers - 1:
            h = jnp.maximum(h, 0.0)
    return h


def propagate_reference(h0, adj_norm, alpha, k, *,
                        mxu_dtype=jnp.float32, round_carry=False):
    """Mirrors the kernels' precision choices (bf16 MXU inputs, f32 accumulate)."""
    hp = jax.lax.Precision.HIGHEST
    adj_q = adj_norm.astype(mxu_dtype)
    h0_q = h0.astype(mxu_dtype).astype(jnp.float32)
    h = h0_q
    for _ in range(k):
        ah = jnp.dot(adj_q, h.astype(mxu_dtype), precision=hp,
                     preferred_element_type=jnp.float32)
        h = (1.0 - alpha) * ah + alpha * h0_q
        if round_carry:   # tiled path stores h in bf16 between hops
            h = h.astype(mxu_dtype).astype(jnp.float32)
    return h


def init_appnp_params(key, in_feats, n_hidden, n_classes, n_layers):
    weights, biases = [], []
    for i in range(n_layers):
        fi = n_hidden if i > 0 else in_feats
        fo = n_hidden if i < n_layers - 1 else n_classes
        key, kw, kb = jax.random.split(key, 3)
        bound = 1.0 / math.sqrt(fi)   # matches nn.Linear.reset_parameters bounds
        weights.append(jax.random.uniform(kw, (fi, fo), jnp.float32, -bound, bound))
        biases.append(jax.random.uniform(kb, (fo,), jnp.float32, -bound, bound))
    return weights, biases


if __name__ == "__main__":
    N = 256
    in_feats = 32
    n_hidden = 32
    n_classes = 8
    n_layers = 3
    alpha = 0.1
    k_hops = 3

    key = jax.random.PRNGKey(0)
    k_feat, k_adj, k_param = jax.random.split(key, 3)

    feat = jax.random.normal(k_feat, (N, in_feats), jnp.float32)

    # Random directed graph: adj[v, u] = 1 iff edge u -> v.
    adj = jax.random.bernoulli(k_adj, 0.05, (N, N)).astype(jnp.float32)
    in_deg = adj.sum(axis=1)    # per destination node
    out_deg = adj.sum(axis=0)   # per source node
    dst_norm = jax.lax.rsqrt(jnp.maximum(in_deg, 1.0))
    src_norm = jax.lax.rsqrt(jnp.maximum(out_deg, 1.0))
    adj_norm = dst_norm[:, None] * adj * src_norm[None, :]   # D^-1/2 A D^-1/2

    weights, biases = init_appnp_params(k_param, in_feats, n_hidden,
                                        n_classes, n_layers)

    # Path 1: fused, fully VMEM-resident propagation (default for small graphs).
    out_fused = appnp_apply(feat, adj_norm, weights, biases, alpha, k_hops)
    # Path 2: tiled HBM-streaming fallback (forced, to exercise the large-graph path).
    out_tiled = appnp_apply(feat, adj_norm, weights, biases, alpha, k_hops,
                            force_tiled=True)
    jax.block_until_ready((out_fused, out_tiled))
    assert out_fused.shape == (N, n_classes)
    assert out_tiled.shape == (N, n_classes)

    # --- MLP kernel structural check (f32) ---------------------------------
    f_in_pad = _round_up(in_feats, LANE)
    n_pad = _round_up(N, 256)
    w_p, b_p = _pad_params(weights, biases, f_in_pad)
    h_mlp = mlp_forward(_pad2(feat, n_pad, f_in_pad), w_p, b_p,
                        tm=256, out_dtype=jnp.float32)[:N, :n_classes]
    h_ref = mlp_reference(feat, weights, biases)
    err_mlp = float(jnp.max(jnp.abs(h_mlp - h_ref)))
    assert err_mlp < 1e-2, f"MLP max abs err {err_mlp}"

    # --- Propagation checks (precision-matched and loose f32) ---------------
    ref_fused = propagate_reference(h_ref, adj_norm, alpha, k_hops,
                                    mxu_dtype=jnp.bfloat16, round_carry=False)
    ref_tiled = propagate_reference(h_ref, adj_norm, alpha, k_hops,
                                    mxu_dtype=jnp.bfloat16, round_carry=True)
    ref_f32 = propagate_reference(h_ref, adj_norm, alpha, k_hops)

    err_fused = float(jnp.max(jnp.abs(out_fused - ref_fused)))
    err_tiled = float(jnp.max(jnp.abs(out_tiled - ref_tiled)))
    assert err_fused < 3e-2, f"fused path max abs err {err_fused}"
    assert err_tiled < 3e-2, f"tiled path max abs err {err_tiled}"

    err_fused_f32 = float(jnp.max(jnp.abs(out_fused - ref_f32)))
    err_tiled_f32 = float(jnp.max(jnp.abs(out_tiled - ref_f32)))
    assert err_fused_f32 < 1e-1, f"fused vs f32 ref {err_fused_f32}"
    assert err_tiled_f32 < 1e-1, f"tiled vs f32 ref {err_tiled_f32}"

    print("KERNEL_OK")
</pallas_src>

<mosaic_0001>
module attributes {stable_mosaic.version = 11 : i64} {
  func.func @_mlp_kernel(%arg0: i32, %arg1: memref<256x128xf32, #tpu.memory_space<vmem>>, %arg2: memref<128x128xf32, #tpu.memory_space<vmem>>, %arg3: memref<1x128xf32, #tpu.memory_space<vmem>>, %arg4: memref<128x128xf32, #tpu.memory_space<vmem>>, %arg5: memref<1x128xf32, #tpu.memory_space<vmem>>, %arg6: memref<128x128xf32, #tpu.memory_space<vmem>>, %arg7: memref<1x128xf32, #tpu.memory_space<vmem>>, %arg8: memref<256x128xbf16, #tpu.memory_space<vmem>>) attributes {dimension_semantics = [#tpu.dimension_semantics<parallel>], iteration_bounds = array<i64: 1>, scalar_prefetch = 0 : i64, scratch_operands = 0 : i64, tpu.core_type = #tpu.core_type<tc>, window_params = [{transform_indices = @transform_0, window_bounds = array<i64: 256, 128>}, {pipeline_mode = #tpu.pipeline_mode<synchronous>, transform_indices = @transform_1, window_bounds = array<i64: 128, 128>}, {pipeline_mode = #tpu.pipeline_mode<synchronous>, transform_indices = @transform_2, window_bounds = array<i64: 1, 128>}, {pipeline_mode = #tpu.pipeline_mode<synchronous>, transform_indices = @transform_3, window_bounds = array<i64: 128, 128>}, {pipeline_mode = #tpu.pipeline_mode<synchronous>, transform_indices = @transform_4, window_bounds = array<i64: 1, 128>}, {pipeline_mode = #tpu.pipeline_mode<synchronous>, transform_indices = @transform_5, window_bounds = array<i64: 128, 128>}, {pipeline_mode = #tpu.pipeline_mode<synchronous>, transform_indices = @transform_6, window_bounds = array<i64: 1, 128>}, {transform_indices = @transform_7, window_bounds = array<i64: 256, 128>}]} {
    %c0 = arith.constant 0 : index
    %c0_0 = arith.constant 0 : index
    %0 = vector.load %arg1[%c0, %c0_0] : memref<256x128xf32, #tpu.memory_space<vmem>>, vector<256x128xf32>
    %c0_1 = arith.constant 0 : index
    %c0_2 = arith.constant 0 : index
    %1 = vector.load %arg2[%c0_1, %c0_2] : memref<128x128xf32, #tpu.memory_space<vmem>>, vector<128x128xf32>
    %c0_3 = arith.constant 0 : index
    %c0_4 = arith.constant 0 : index
    %2 = vector.load %arg3[%c0_3, %c0_4] : memref<1x128xf32, #tpu.memory_space<vmem>>, vector<1x128xf32>
    %cst = arith.constant dense<0.000000e+00> : vector<256x128xf32>
    %3 = tpu.matmul %0, %1, %cst {dimension_numbers = #tpu.dot_dimension_numbers<[1], [0], [0], [1], [0, 0, 1, 1], [], []>} : vector<256x128xf32>, vector<128x128xf32>, vector<256x128xf32> -> vector<256x128xf32>
    %4 = vector.broadcast %2 : vector<1x128xf32> to vector<256x128xf32>
    %5 = arith.addf %3, %4 : vector<256x128xf32>
    %cst_5 = arith.constant 0.000000e+00 : f32
    %6 = vector.broadcast %cst_5 : f32 to vector<256x128xf32>
    %7 = arith.maximumf %5, %6 : vector<256x128xf32>
    %c0_6 = arith.constant 0 : index
    %c0_7 = arith.constant 0 : index
    %8 = vector.load %arg4[%c0_6, %c0_7] : memref<128x128xf32, #tpu.memory_space<vmem>>, vector<128x128xf32>
    %c0_8 = arith.constant 0 : index
    %c0_9 = arith.constant 0 : index
    %9 = vector.load %arg5[%c0_8, %c0_9] : memref<1x128xf32, #tpu.memory_space<vmem>>, vector<1x128xf32>
    %cst_10 = arith.constant dense<0.000000e+00> : vector<256x128xf32>
    %10 = tpu.matmul %7, %8, %cst_10 {dimension_numbers = #tpu.dot_dimension_numbers<[1], [0], [0], [1], [0, 0, 1, 1], [], []>} : vector<256x128xf32>, vector<128x128xf32>, vector<256x128xf32> -> vector<256x128xf32>
    %11 = vector.broadcast %9 : vector<1x128xf32> to vector<256x128xf32>
    %12 = arith.addf %10, %11 : vector<256x128xf32>
    %cst_11 = arith.constant 0.000000e+00 : f32
    %13 = vector.broadcast %cst_11 : f32 to vector<256x128xf32>
    %14 = arith.maximumf %12, %13 : vector<256x128xf32>
    %c0_12 = arith.constant 0 : index
    %c0_13 = arith.constant 0 : index
    %15 = vector.load %arg6[%c0_12, %c0_13] : memref<128x128xf32, #tpu.memory_space<vmem>>, vector<128x128xf32>
    %c0_14 = arith.constant 0 : index
    %c0_15 = arith.constant 0 : index
    %16 = vector.load %arg7[%c0_14, %c0_15] : memref<1x128xf32, #tpu.memory_space<vmem>>, vector<1x128xf32>
    %cst_16 = arith.constant dense<0.000000e+00> : vector<256x128xf32>
    %17 = tpu.matmul %14, %15, %cst_16 {dimension_numbers = #tpu.dot_dimension_numbers<[1], [0], [0], [1], [0, 0, 1, 1], [], []>} : vector<256x128xf32>, vector<128x128xf32>, vector<256x128xf32> -> vector<256x128xf32>
    %18 = vector.broadcast %16 : vector<1x128xf32> to vector<256x128xf32>
    %19 = arith.addf %17, %18 : vector<256x128xf32>
    %20 = arith.truncf %19 : vector<256x128xf32> to vector<256x128xbf16>
    %c0_17 = arith.constant 0 : index
    %c0_18 = arith.constant 0 : index
    %21 = vector.load %arg8[%c0_17, %c0_18] : memref<256x128xbf16, #tpu.memory_space<vmem>>, vector<256x128xbf16>
    tpu.vector_store %arg8[%c0_17, %c0_18], %20 {strides = array<i32>} : memref<256x128xbf16, #tpu.memory_space<vmem>>, vector<256x128xbf16>,
    return
  }
  func.func @transform_0(%arg0: i32) -> (i32, i32) {
    %c0_i32 = arith.constant 0 : i32
    %c0_i32_0 = arith.constant 0 : i32
    return %arg0, %c0_i32 : i32, i32
  }
  func.func @transform_1(%arg0: i32) -> (i32, i32) {
    %c0_i32 = arith.constant 0 : i32
    %c0_i32_0 = arith.constant 0 : i32
    %c0_i32_1 = arith.constant 0 : i32
    return %c0_i32, %c0_i32_0 : i32, i32
  }
  func.func @transform_2(%arg0: i32) -> (i32, i32) {
    %c0_i32 = arith.constant 0 : i32
    %c0_i32_0 = arith.constant 0 : i32
    %c0_i32_1 = arith.constant 0 : i32
    return %c0_i32, %c0_i32_0 : i32, i32
  }
  func.func @transform_3(%arg0: i32) -> (i32, i32) {
    %c0_i32 = arith.constant 0 : i32
    %c0_i32_0 = arith.constant 0 : i32
    %c0_i32_1 = arith.constant 0 : i32
    return %c0_i32, %c0_i32_0 : i32, i32
  }
  func.func @transform_4(%arg0: i32) -> (i32, i32) {
    %c0_i32 = arith.constant 0 : i32
    %c0_i32_0 = arith.constant 0 : i32
    %c0_i32_1 = arith.constant 0 : i32
    return %c0_i32, %c0_i32_0 : i32, i32
  }
  func.func @transform_5(%arg0: i32) -> (i32, i32) {
    %c0_i32 = arith.constant 0 : i32
    %c0_i32_0 = arith.constant 0 : i32
    %c0_i32_1 = arith.constant 0 : i32
    return %c0_i32, %c0_i32_0 : i32, i32
  }
  func.func @transform_6(%arg0: i32) -> (i32, i32) {
    %c0_i32 = arith.constant 0 : i32
    %c0_i32_0 = arith.constant 0 : i32
    %c0_i32_1 = arith.constant 0 : i32
    return %c0_i32, %c0_i32_0 : i32, i32
  }
  func.func @transform_7(%arg0: i32) -> (i32, i32) {
    %c0_i32 = arith.constant 0 : i32
    %c0_i32_0 = arith.constant 0 : i32
    return %arg0, %c0_i32 : i32, i32
  }
}

</mosaic_0001>

<llo_original>
// kernel: tpu_custom_call.1
$region0: #{tpu_custom_call.1}
  #allocation0 [shape = 'u32[]', space=smem, size = 0x4, offset = 0x4, fixed_abs, tag = 'smem constant byte address 0x4 - core index']
  #allocation1 [shape = 'u32[72,128]{1,0:T(1,128)}', space=vmem, size = 0x9000, scoped, tag = 'internal scratch']
  %s0 = inlined_call_operand.hbm [shape: f32[256,128], index: 0, kind: input, shape index: {}]
  %s1 = inlined_call_operand.hbm [shape: f32[128,128], index: 1, kind: input, shape index: {}]
  %s2 = inlined_call_operand.vmem [shape: f32[1,128], index: 2, kind: input, shape index: {}]
  %s3 = inlined_call_operand.hbm [shape: f32[128,128], index: 3, kind: input, shape index: {}]
  %s4 = inlined_call_operand.vmem [shape: f32[1,128], index: 4, kind: input, shape index: {}]
  %s5 = inlined_call_operand.hbm [shape: f32[128,128], index: 5, kind: input, shape index: {}]
  %s6 = inlined_call_operand.vmem [shape: f32[1,128], index: 6, kind: input, shape index: {}]
  %s7 = inlined_call_operand.hbm [shape: bf16[256,128], index: 7, kind: output, shape index: {}]
  %s8 = sld [smem:[#allocation0]]
  $region54: #{tpu_custom_call.1} parent=0
    _
  %s10 = ssub.s32 1, %s8
  %s11 = scalar_select 0, %s10, %s8
  $region1: #{tpu_custom_call.1} parent=0
    #allocation2 [shape = 'u8[131072]{0}', space=vmem, size = 0x20000, scoped, tag = 'input window, operand 0, single buffered']
    #allocation3 [shape = 's32[1]{0}', space=sflag, size = 0x4, scoped, tag = 'scoped memory for tpu_custom_call.1']
    #allocation4 [shape = 's32[1]{0}', space=sflag, size = 0x4, scoped, tag = 'scoped memory for tpu_custom_call.1']
    #allocation5 [shape = 'u8[65536]{0}', space=vmem, size = 0x10000, scoped, tag = 'input window, operand 1, single buffered']
    #allocation6 [shape = 's32[1]{0}', space=sflag, size = 0x4, scoped, tag = 'scoped memory for tpu_custom_call.1']
    #allocation7 [shape = 'u8[65536]{0}', space=vmem, size = 0x10000, scoped, tag = 'input window, operand 3, single buffered']
    #allocation8 [shape = 'u8[65536]{0}', space=vmem, size = 0x10000, scoped, tag = 'input window, operand 5, single buffered']
    #allocation9 [shape = 's32[1]{0}', space=sflag, size = 0x4, scoped, tag = 'scoped memory for tpu_custom_call.1']
    #allocation10 [shape = 'u8[65536]{0}', space=vmem, size = 0x10000, scoped, tag = 'output window, operand 0, single buffered']
    %12 = vsyncpa [#allocation3], 0
    %13 = vsyncpa [#allocation6], 0
    %14 = vsyncpa [#allocation9], 0
    %15 = vsyncpa [#allocation4], 0
    // Predicated region
    $region2: #{tpu_custom_call.1} parent=1 // pred_check
      _
    $region3: #{tpu_custom_call.1} parent=1 // pred_check_branch
      %17 = sbr.rel (0) target = $region5
    $region4: #{tpu_custom_call.1} parent=1 // pred_region
      %19 = vsyncadd [#allocation3], 0
      %s20 = sshll.u32 %s0, 4
      %s21 = int_to_ptr.hbm [resolvable:$true] %s20
      %s22 = sshll.u32 [#allocation2], 4
      %s23 = int_to_ptr.vmem [resolvable:$true] %s22
      %28 = dma.hbm_to_vmem [thread:$0]  %s21, 4096, %s23, [#allocation3], 128, 128, 8
    $region5: #{tpu_custom_call.1} parent=1 // pred_fallthru
      _
    // Predicated region
    $region6: #{tpu_custom_call.1} parent=1 // pred_check
      _
    $region7: #{tpu_custom_call.1} parent=1 // pred_check_branch
      %30 = sbr.rel (0) target = $region9
    $region8: #{tpu_custom_call.1} parent=1 // pred_region
      %32 = vsyncadd [#allocation6], 0
      %s33 = sshll.u32 %s1, 4
      %s34 = int_to_ptr.hbm [resolvable:$true] %s33
      %s35 = sshll.u32 [#allocation5], 4
      %s36 = int_to_ptr.vmem [resolvable:$true] %s35
      %41 = dma.hbm_to_vmem [thread:$0]  %s34, 2048, %s36, [#allocation6], 128, 128, 8
    $region9: #{tpu_custom_call.1} parent=1 // pred_fallthru
      _
    // Predicated region
    $region10: #{tpu_custom_call.1} parent=1 // pred_check
      _
    $region11: #{tpu_custom_call.1} parent=1 // pred_check_branch
      %43 = sbr.rel (0) target = $region13
    $region12: #{tpu_custom_call.1} parent=1 // pred_region
      _
    $region13: #{tpu_custom_call.1} parent=1 // pred_fallthru
      _
    // Predicated region
    $region14: #{tpu_custom_call.1} parent=1 // pred_check
      _
    $region15: #{tpu_custom_call.1} parent=1 // pred_check_branch
      %45 = sbr.rel (0) target = $region17
    $region16: #{tpu_custom_call.1} parent=1 // pred_region
      %47 = vsyncadd [#allocation6], 0
      %s48 = sshll.u32 %s3, 4
      %s49 = int_to_ptr.hbm [resolvable:$true] %s48
      %s50 = sshll.u32 [#allocation7], 4
      %s51 = int_to_ptr.vmem [resolvable:$true] %s50
      %56 = dma.hbm_to_vmem [thread:$0]  %s49, 2048, %s51, [#allocation6], 128, 128, 8
    $region17: #{tpu_custom_call.1} parent=1 // pred_fallthru
      _
    // Predicated region
    $region18: #{tpu_custom_call.1} parent=1 // pred_check
      _
    $region19: #{tpu_custom_call.1} parent=1 // pred_check_branch
      %58 = sbr.rel (0) target = $region21
    $region20: #{tpu_custom_call.1} parent=1 // pred_region
      _
    $region21: #{tpu_custom_call.1} parent=1 // pred_fallthru
      _
    // Predicated region
    $region22: #{tpu_custom_call.1} parent=1 // pred_check
      _
    $region23: #{tpu_custom_call.1} parent=1 // pred_check_branch
      %60 = sbr.rel (0) target = $region25
    $region24: #{tpu_custom_call.1} parent=1 // pred_region
      %62 = vsyncadd [#allocation9], 0
      %s63 = sshll.u32 %s5, 4
      %s64 = int_to_ptr.hbm [resolvable:$true] %s63
      %s65 = sshll.u32 [#allocation8], 4
      %s66 = int_to_ptr.vmem [resolvable:$true] %s65
      %71 = dma.hbm_to_vmem [thread:$0]  %s64, 2048, %s66, [#allocation9], 128, 128, 8
    $region25: #{tpu_custom_call.1} parent=1 // pred_fallthru
      _
    // Predicated region
    $region26: #{tpu_custom_call.1} parent=1 // pred_check
      _
    $region27: #{tpu_custom_call.1} parent=1 // pred_check_branch
      %73 = sbr.rel (0) target = $region29
    $region28: #{tpu_custom_call.1} parent=1 // pred_region
      _
    $region29: #{tpu_custom_call.1} parent=1 // pred_fallthru
      _
    // Predicated region
    $region30: #{tpu_custom_call.1} parent=1 // pred_check
      _
    $region31: #{tpu_custom_call.1} parent=1 // pred_check_branch
      %75 = sbr.rel (0) target = $region33
    $region32: #{tpu_custom_call.1} parent=1 // pred_region
      %77 = dma.done [#allocation3], 4096
    $region33: #{tpu_custom_call.1} parent=1 // pred_fallthru
      _
    // Predicated region
    $region34: #{tpu_custom_call.1} parent=1 // pred_check
      _
    $region35: #{tpu_custom_call.1} parent=1 // pred_check_branch
      %79 = sbr.rel (0) target = $region37
    $region36: #{tpu_custom_call.1} parent=1 // pred_region
      %81 = dma.done [#allocation6], 2048
    $region37: #{tpu_custom_call.1} parent=1 // pred_fallthru
      _
    // Predicated region
    $region38: #{tpu_custom_call.1} parent=1 // pred_check
      _
    $region39: #{tpu_custom_call.1} parent=1 // pred_check_branch
      %83 = sbr.rel (0) target = $region41
    $region40: #{tpu_custom_call.1} parent=1 // pred_region
      %85 = dma.done [#allocation6], 2048
    $region41: #{tpu_custom_call.1} parent=1 // pred_fallthru
      _
    // Predicated region
    $region42: #{tpu_custom_call.1} parent=1 // pred_check
      _
    $region43: #{tpu_custom_call.1} parent=1 // pred_check_branch
      %87 = sbr.rel (0) target = $region45
    $region44: #{tpu_custom_call.1} parent=1 // pred_region
      %89 = dma.done [#allocation9], 2048
    $region45: #{tpu_custom_call.1} parent=1 // pred_fallthru
      _
    %v90 = vld [vmem:[#allocation2] sm:$0xff]
    %v91 = vld [vmem:[#allocation2 + $0x8] sm:$0xff]
    %v92 = vld [vmem:[#allocation2 + $0x10] sm:$0xff]
    %v93 = vld [vmem:[#allocation2 + $0x18] sm:$0xff]
    %v94 = vld [vmem:[#allocation2 + $0x20] sm:$0xff]
    %v95 = vld [vmem:[#allocation2 + $0x28] sm:$0xff]
    %v96 = vld [vmem:[#allocation2 + $0x30] sm:$0xff]
    %v97 = vld [vmem:[#allocation2 + $0x38] sm:$0xff]
    %v98 = vld [vmem:[#allocation2 + $0x40] sm:$0xff]
    %v99 = vld [vmem:[#allocation2 + $0x48] sm:$0xff]
    %v100 = vld [vmem:[#allocation2 + $0x50] sm:$0xff]
    %v101 = vld [vmem:[#allocation2 + $0x58] sm:$0xff]
    %v102 = vld [vmem:[#allocation2 + $0x60] sm:$0xff]
    %v103 = vld [vmem:[#allocation2 + $0x68] sm:$0xff]
    %v104 = vld [vmem:[#allocation2 + $0x70] sm:$0xff]
    %v105 = vld [vmem:[#allocation2 + $0x78] sm:$0xff]
    %v106 = vld [vmem:[#allocation2 + $0x80] sm:$0xff]
    %v107 = vld [vmem:[#allocation2 + $0x88] sm:$0xff]
    %v108 = vld [vmem:[#allocation2 + $0x90] sm:$0xff]
    %v109 = vld [vmem:[#allocation2 + $0x98] sm:$0xff]
    %v110 = vld [vmem:[#allocation2 + $0xa0] sm:$0xff]
    %v111 = vld [vmem:[#allocation2 + $0xa8] sm:$0xff]
    %v112 = vld [vmem:[#allocation2 + $0xb0] sm:$0xff]
    %v113 = vld [vmem:[#allocation2 + $0xb8] sm:$0xff]
    %v114 = vld [vmem:[#allocation2 + $0xc0] sm:$0xff]
    %v115 = vld [vmem:[#allocation2 + $0xc8] sm:$0xff]
    %v116 = vld [vmem:[#allocation2 + $0xd0] sm:$0xff]
    %v117 = vld [vmem:[#allocation2 + $0xd8] sm:$0xff]
    %v118 = vld [vmem:[#allocation2 + $0xe0] sm:$0xff]
    %v119 = vld [vmem:[#allocation2 + $0xe8] sm:$0xff]
    %v120 = vld [vmem:[#allocation2 + $0xf0] sm:$0xff]
    %v121 = vld [vmem:[#allocation2 + $0xf8] sm:$0xff]
    %v122 = vld [vmem:[#allocation5] sm:$0xff]
    %v123 = vld [vmem:[#allocation5 + $0x8] sm:$0xff]
    %v124 = vld [vmem:[#allocation5 + $0x10] sm:$0xff]
    %v125 = vld [vmem:[#allocation5 + $0x18] sm:$0xff]
    %v126 = vld [vmem:[#allocation5 + $0x20] sm:$0xff]
    %v127 = vld [vmem:[#allocation5 + $0x28] sm:$0xff]
    %v128 = vld [vmem:[#allocation5 + $0x30] sm:$0xff]
    %v129 = vld [vmem:[#allocation5 + $0x38] sm:$0xff]
    %v130 = vld [vmem:[#allocation5 + $0x40] sm:$0xff]
    %v131 = vld [vmem:[#allocation5 + $0x48] sm:$0xff]
    %v132 = vld [vmem:[#allocation5 + $0x50] sm:$0xff]
    %v133 = vld [vmem:[#allocation5 + $0x58] sm:$0xff]
    %v134 = vld [vmem:[#allocation5 + $0x60] sm:$0xff]
    %v135 = vld [vmem:[#allocation5 + $0x68] sm:$0xff]
    %v136 = vld [vmem:[#allocation5 + $0x70] sm:$0xff]
    %v137 = vld [vmem:[#allocation5 + $0x78] sm:$0xff]
    %v138 = vld [vmem:[%s2] sm:$0x1]
    %v140 = vperm.slane %v138, 0
    %142 = vmatpush.msra.mxu0 %v137
    %143 = vmatpush.msra.mxu0 %v136
    %144 = vmatpush.msra.mxu0 %v135
    %145 = vmatpush.msra.mxu0 %v134
    %146 = vmatpush.msra.mxu0 %v133
    %147 = vmatpush.msra.mxu0 %v132
    %148 = vmatpush.msra.mxu0 %v131
    %149 = vmatpush.msra.mxu0 %v130
    %150 = vmatpush.msra.mxu0 %v129
    %151 = vmatpush.msra.mxu0 %v128
    %152 = vmatpush.msra.mxu0 %v127
    %153 = vmatpush.msra.mxu0 %v126
    %154 = vmatpush.msra.mxu0 %v125
    %155 = vmatpush.msra.mxu0 %v124
    %156 = vmatpush.msra.mxu0 %v123
    %157 = vmatpush.msra.mxu0 %v122
    %158 = vmatmul.f32.gmra.mxu0 %v90
    %v159 = vpop.f32.mrf.mxu0
    %v160 = vadd.f32 %v140, %v159
    %161 = vmatmul.f32.gmra.mxu0 %v91
    %v162 = vpop.f32.mrf.mxu0
    %v163 = vadd.f32 %v140, %v162
    %164 = vmatmul.f32.gmra.mxu0 %v92
    %v165 = vpop.f32.mrf.mxu0
    %v166 = vadd.f32 %v140, %v165
    %167 = vmatmul.f32.gmra.mxu0 %v93
    %v168 = vpop.f32.mrf.mxu0
    %v169 = vadd.f32 %v140, %v168
    %170 = vmatmul.f32.gmra.mxu0 %v94
    %v171 = vpop.f32.mrf.mxu0
    %v172 = vadd.f32 %v140, %v171
    %173 = vmatmul.f32.gmra.mxu0 %v95
    %v174 = vpop.f32.mrf.mxu0
    %v175 = vadd.f32 %v140, %v174
    %176 = vmatmul.f32.gmra.mxu0 %v96
    %v177 = vpop.f32.mrf.mxu0
    %v178 = vadd.f32 %v140, %v177
    %179 = vmatmul.f32.gmra.mxu0 %v97
    %v180 = vpop.f32.mrf.mxu0
    %v181 = vadd.f32 %v140, %v180
    %182 = vmatmul.f32.gmra.mxu0 %v98
    %v183 = vpop.f32.mrf.mxu0
    %v184 = vadd.f32 %v140, %v183
    %185 = vmatmul.f32.gmra.mxu0 %v99
    %v186 = vpop.f32.mrf.mxu0
    %v187 = vadd.f32 %v140, %v186
    %188 = vmatmul.f32.gmra.mxu0 %v100
    %v189 = vpop.f32.mrf.mxu0
    %v190 = vadd.f32 %v140, %v189
    %191 = vmatmul.f32.gmra.mxu0 %v101
    %v192 = vpop.f32.mrf.mxu0
    %v193 = vadd.f32 %v140, %v192
    %194 = vmatmul.f32.gmra.mxu0 %v102
    %v195 = vpop.f32.mrf.mxu0
    %v196 = vadd.f32 %v140, %v195
    %197 = vmatmul.f32.gmra.mxu0 %v103
    %v198 = vpop.f32.mrf.mxu0
    %v199 = vadd.f32 %v140, %v198
    %200 = vmatmul.f32.gmra.mxu0 %v104
    %v201 = vpop.f32.mrf.mxu0
    %v202 = vadd.f32 %v140, %v201
    %203 = vmatmul.f32.gmra.mxu0 %v105
    %v204 = vpop.f32.mrf.mxu0
    %v205 = vadd.f32 %v140, %v204
    %206 = vmatmul.f32.gmra.mxu0 %v106
    %v207 = vpop.f32.mrf.mxu0
    %v208 = vadd.f32 %v140, %v207
    %209 = vmatmul.f32.gmra.mxu0 %v107
    %v210 = vpop.f32.mrf.mxu0
    %v211 = vadd.f32 %v140, %v210
    %212 = vmatmul.f32.gmra.mxu0 %v108
    %v213 = vpop.f32.mrf.mxu0
    %v214 = vadd.f32 %v140, %v213
    %215 = vmatmul.f32.gmra.mxu0 %v109
    %v216 = vpop.f32.mrf.mxu0
    %v217 = vadd.f32 %v140, %v216
    %218 = vmatmul.f32.gmra.mxu0 %v110
    %v219 = vpop.f32.mrf.mxu0
    %v220 = vadd.f32 %v140, %v219
    %221 = vmatmul.f32.gmra.mxu0 %v111
    %v222 = vpop.f32.mrf.mxu0
    %v223 = vadd.f32 %v140, %v222
    %224 = vmatmul.f32.gmra.mxu0 %v112
    %v225 = vpop.f32.mrf.mxu0
    %v226 = vadd.f32 %v140, %v225
    %227 = vmatmul.f32.gmra.mxu0 %v113
    %v228 = vpop.f32.mrf.mxu0
    %v229 = vadd.f32 %v140, %v228
    %230 = vmatmul.f32.gmra.mxu0 %v114
    %v231 = vpop.f32.mrf.mxu0
    %v232 = vadd.f32 %v140, %v231
    %233 = vmatmul.f32.gmra.mxu0 %v115
    %v234 = vpop.f32.mrf.mxu0
    %v235 = vadd.f32 %v140, %v234
    %236 = vmatmul.f32.gmra.mxu0 %v116
    %v237 = vpop.f32.mrf.mxu0
    %v238 = vadd.f32 %v140, %v237
    %239 = vmatmul.f32.gmra.mxu0 %v117
    %v240 = vpop.f32.mrf.mxu0
    %v241 = vadd.f32 %v140, %v240
    %242 = vmatmul.f32.gmra.mxu0 %v118
    %v243 = vpop.f32.mrf.mxu0
    %v244 = vadd.f32 %v140, %v243
    %245 = vmatmul.f32.gmra.mxu0 %v119
    %v246 = vpop.f32.mrf.mxu0
    %v247 = vadd.f32 %v140, %v246
    %248 = vmatmul.f32.gmra.mxu0 %v120
    %v249 = vpop.f32.mrf.mxu0
    %v250 = vadd.f32 %v140, %v249
    %251 = vmatmul.f32.gmra.mxu0 %v121
    %v252 = vpop.f32.mrf.mxu0
    %v253 = vadd.f32 %v140, %v252
    %254 = vdwg.mxu0
    %v255 = vmax.f32 %v160, 0.0
    %v256 = vmax.f32 %v163, 0.0
    %v257 = vmax.f32 %v166, 0.0
    %v258 = vmax.f32 %v169, 0.0
    %v259 = vmax.f32 %v172, 0.0
    %v260 = vmax.f32 %v175, 0.0
    %v261 = vmax.f32 %v178, 0.0
    %v262 = vmax.f32 %v181, 0.0
    %v263 = vmax.f32 %v184, 0.0
    %v264 = vmax.f32 %v187, 0.0
    %v265 = vmax.f32 %v190, 0.0
    %v266 = vmax.f32 %v193, 0.0
    %v267 = vmax.f32 %v196, 0.0
    %v268 = vmax.f32 %v199, 0.0
    %v269 = vmax.f32 %v202, 0.0
    %v270 = vmax.f32 %v205, 0.0
    %v271 = vmax.f32 %v208, 0.0
    %v272 = vmax.f32 %v211, 0.0
    %v273 = vmax.f32 %v214, 0.0
    %v274 = vmax.f32 %v217, 0.0
    %v275 = vmax.f32 %v220, 0.0
    %v276 = vmax.f32 %v223, 0.0
    %v277 = vmax.f32 %v226, 0.0
    %v278 = vmax.f32 %v229, 0.0
    %v279 = vmax.f32 %v232, 0.0
    %v280 = vmax.f32 %v235, 0.0
    %v281 = vmax.f32 %v238, 0.0
    %v282 = vmax.f32 %v241, 0.0
    %v283 = vmax.f32 %v244, 0.0
    %v284 = vmax.f32 %v247, 0.0
    %v285 = vmax.f32 %v250, 0.0
    %v286 = vmax.f32 %v253, 0.0
    %v287 = vld [vmem:[#allocation7] sm:$0xff]
    %v288 = vld [vmem:[#allocation7 + $0x8] sm:$0xff]
    %v289 = vld [vmem:[#allocation7 + $0x10] sm:$0xff]
    %v290 = vld [vmem:[#allocation7 + $0x18] sm:$0xff]
    %v291 = vld [vmem:[#allocation7 + $0x20] sm:$0xff]
    %v292 = vld [vmem:[#allocation7 + $0x28] sm:$0xff]
    %v293 = vld [vmem:[#allocation7 + $0x30] sm:$0xff]
    %v294 = vld [vmem:[#allocation7 + $0x38] sm:$0xff]
    %v295 = vld [vmem:[#allocation7 + $0x40] sm:$0xff]
    %v296 = vld [vmem:[#allocation7 + $0x48] sm:$0xff]
    %v297 = vld [vmem:[#allocation7 + $0x50] sm:$0xff]
    %v298 = vld [vmem:[#allocation7 + $0x58] sm:$0xff]
    %v299 = vld [vmem:[#allocation7 + $0x60] sm:$0xff]
    %v300 = vld [vmem:[#allocation7 + $0x68] sm:$0xff]
    %v301 = vld [vmem:[#allocation7 + $0x70] sm:$0xff]
    %v302 = vld [vmem:[#allocation7 + $0x78] sm:$0xff]
    %v303 = vld [vmem:[%s4] sm:$0x1]
    %v305 = vperm.slane %v303, 0
    %307 = vmatpush.msra.mxu0 %v302
    %308 = vmatpush.msra.mxu0 %v301
    %309 = vmatpush.msra.mxu0 %v300
    %310 = vmatpush.msra.mxu0 %v299
    %311 = vmatpush.msra.mxu0 %v298
    %312 = vmatpush.msra.mxu0 %v297
    %313 = vmatpush.msra.mxu0 %v296
    %314 = vmatpush.msra.mxu0 %v295
    %315 = vmatpush.msra.mxu0 %v294
    %316 = vmatpush.msra.mxu0 %v293
    %317 = vmatpush.msra.mxu0 %v292
    %318 = vmatpush.msra.mxu0 %v291
    %319 = vmatpush.msra.mxu0 %v290
    %320 = vmatpush.msra.mxu0 %v289
    %321 = vmatpush.msra.mxu0 %v288
    %322 = vmatpush.msra.mxu0 %v287
    %323 = vmatmul.f32.gmra.mxu0 %v255
    %v324 = vpop.f32.mrf.mxu0
    %v325 = vadd.f32 %v305, %v324
    %326 = vmatmul.f32.gmra.mxu0 %v256
    %v327 = vpop.f32.mrf.mxu0
    %v328 = vadd.f32 %v305, %v327
    %329 = vmatmul.f32.gmra.mxu0 %v257
    %v330 = vpop.f32.mrf.mxu0
    %v331 = vadd.f32 %v305, %v330
    %332 = vmatmul.f32.gmra.mxu0 %v258
    %v333 = vpop.f32.mrf.mxu0
    %v334 = vadd.f32 %v305, %v333
    %335 = vmatmul.f32.gmra.mxu0 %v259
    %v336 = vpop.f32.mrf.mxu0
    %v337 = vadd.f32 %v305, %v336
    %338 = vmatmul.f32.gmra.mxu0 %v260
    %v339 = vpop.f32.mrf.mxu0
    %v340 = vadd.f32 %v305, %v339
    %341 = vmatmul.f32.gmra.mxu0 %v261
    %v342 = vpop.f32.mrf.mxu0
    %v343 = vadd.f32 %v305, %v342
    %344 = vmatmul.f32.gmra.mxu0 %v262
    %v345 = vpop.f32.mrf.mxu0
    %v346 = vadd.f32 %v305, %v345
    %347 = vmatmul.f32.gmra.mxu0 %v263
    %v348 = vpop.f32.mrf.mxu0
    %v349 = vadd.f32 %v305, %v348
    %350 = vmatmul.f32.gmra.mxu0 %v264
    %v351 = vpop.f32.mrf.mxu0
    %v352 = vadd.f32 %v305, %v351
    %353 = vmatmul.f32.gmra.mxu0 %v265
    %v354 = vpop.f32.mrf.mxu0
    %v355 = vadd.f32 %v305, %v354
    %356 = vmatmul.f32.gmra.mxu0 %v266
    %v357 = vpop.f32.mrf.mxu0
    %v358 = vadd.f32 %v305, %v357
    %359 = vmatmul.f32.gmra.mxu0 %v267
    %v360 = vpop.f32.mrf.mxu0
    %v361 = vadd.f32 %v305, %v360
    %362 = vmatmul.f32.gmra.mxu0 %v268
    %v363 = vpop.f32.mrf.mxu0
    %v364 = vadd.f32 %v305, %v363
    %365 = vmatmul.f32.gmra.mxu0 %v269
    %v366 = vpop.f32.mrf.mxu0
    %v367 = vadd.f32 %v305, %v366
    %368 = vmatmul.f32.gmra.mxu0 %v270
    %v369 = vpop.f32.mrf.mxu0
    %v370 = vadd.f32 %v305, %v369
    %371 = vmatmul.f32.gmra.mxu0 %v271
    %v372 = vpop.f32.mrf.mxu0
    %v373 = vadd.f32 %v305, %v372
    %374 = vmatmul.f32.gmra.mxu0 %v272
    %v375 = vpop.f32.mrf.mxu0
    %v376 = vadd.f32 %v305, %v375
    %377 = vmatmul.f32.gmra.mxu0 %v273
    %v378 = vpop.f32.mrf.mxu0
    %v379 = vadd.f32 %v305, %v378
    %380 = vmatmul.f32.gmra.mxu0 %v274
    %v381 = vpop.f32.mrf.mxu0
    %v382 = vadd.f32 %v305, %v381
    %383 = vmatmul.f32.gmra.mxu0 %v275
    %v384 = vpop.f32.mrf.mxu0
    %v385 = vadd.f32 %v305, %v384
    %386 = vmatmul.f32.gmra.mxu0 %v276
    %v387 = vpop.f32.mrf.mxu0
    %v388 = vadd.f32 %v305, %v387
    %389 = vmatmul.f32.gmra.mxu0 %v277
    %v390 = vpop.f32.mrf.mxu0
    %v391 = vadd.f32 %v305, %v390
    %392 = vmatmul.f32.gmra.mxu0 %v278
    %v393 = vpop.f32.mrf.mxu0
    %v394 = vadd.f32 %v305, %v393
    %395 = vmatmul.f32.gmra.mxu0 %v279
    %v396 = vpop.f32.mrf.mxu0
    %v397 = vadd.f32 %v305, %v396
    %398 = vmatmul.f32.gmra.mxu0 %v280
    %v399 = vpop.f32.mrf.mxu0
    %v400 = vadd.f32 %v305, %v399
    %401 = vmatmul.f32.gmra.mxu0 %v281
    %v402 = vpop.f32.mrf.mxu0
    %v403 = vadd.f32 %v305, %v402
    %404 = vmatmul.f32.gmra.mxu0 %v282
    %v405 = vpop.f32.mrf.mxu0
    %v406 = vadd.f32 %v305, %v405
    %407 = vmatmul.f32.gmra.mxu0 %v283
    %v408 = vpop.f32.mrf.mxu0
    %v409 = vadd.f32 %v305, %v408
    %410 = vmatmul.f32.gmra.mxu0 %v284
    %v411 = vpop.f32.mrf.mxu0
    %v412 = vadd.f32 %v305, %v411
    %413 = vmatmul.f32.gmra.mxu0 %v285
    %v414 = vpop.f32.mrf.mxu0
    %v415 = vadd.f32 %v305, %v414
    %416 = vmatmul.f32.gmra.mxu0 %v286
    %v417 = vpop.f32.mrf.mxu0
    %v418 = vadd.f32 %v305, %v417
    %419 = vdwg.mxu0
    %v420 = vmax.f32 %v325, 0.0
    %v421 = vmax.f32 %v328, 0.0
    %v422 = vmax.f32 %v331, 0.0
    %v423 = vmax.f32 %v334, 0.0
    %v424 = vmax.f32 %v337, 0.0
    %v425 = vmax.f32 %v340, 0.0
    %v426 = vmax.f32 %v343, 0.0
    %v427 = vmax.f32 %v346, 0.0
    %v428 = vmax.f32 %v349, 0.0
    %v429 = vmax.f32 %v352, 0.0
    %v430 = vmax.f32 %v355, 0.0
    %v431 = vmax.f32 %v358, 0.0
    %v432 = vmax.f32 %v361, 0.0
    %v433 = vmax.f32 %v364, 0.0
    %v434 = vmax.f32 %v367, 0.0
    %v435 = vmax.f32 %v370, 0.0
    %v436 = vmax.f32 %v373, 0.0
    %v437 = vmax.f32 %v376, 0.0
    %v438 = vmax.f32 %v379, 0.0
    %v439 = vmax.f32 %v382, 0.0
    %v440 = vmax.f32 %v385, 0.0
    %v441 = vmax.f32 %v388, 0.0
    %v442 = vmax.f32 %v391, 0.0
    %v443 = vmax.f32 %v394, 0.0
    %v444 = vmax.f32 %v397, 0.0
    %v445 = vmax.f32 %v400, 0.0
    %v446 = vmax.f32 %v403, 0.0
    %v447 = vmax.f32 %v406, 0.0
    %v448 = vmax.f32 %v409, 0.0
    %v449 = vmax.f32 %v412, 0.0
    %v450 = vmax.f32 %v415, 0.0
    %v451 = vmax.f32 %v418, 0.0
    %v452 = vld [vmem:[#allocation8] sm:$0xff]
    %v453 = vld [vmem:[#allocation8 + $0x8] sm:$0xff]
    %v454 = vld [vmem:[#allocation8 + $0x10] sm:$0xff]
    %v455 = vld [vmem:[#allocation8 + $0x18] sm:$0xff]
    %v456 = vld [vmem:[#allocation8 + $0x20] sm:$0xff]
    %v457 = vld [vmem:[#allocation8 + $0x28] sm:$0xff]
    %v458 = vld [vmem:[#allocation8 + $0x30] sm:$0xff]
    %v459 = vld [vmem:[#allocation8 + $0x38] sm:$0xff]
    %v460 = vld [vmem:[#allocation8 + $0x40] sm:$0xff]
    %v461 = vld [vmem:[#allocation8 + $0x48] sm:$0xff]
    %v462 = vld [vmem:[#allocation8 + $0x50] sm:$0xff]
    %v463 = vld [vmem:[#allocation8 + $0x58] sm:$0xff]
    %v464 = vld [vmem:[#allocation8 + $0x60] sm:$0xff]
    %v465 = vld [vmem:[#allocation8 + $0x68] sm:$0xff]
    %v466 = vld [vmem:[#allocation8 + $0x70] sm:$0xff]
    %v467 = vld [vmem:[#allocation8 + $0x78] sm:$0xff]
    %v468 = vld [vmem:[%s6] sm:$0x1]
    %v470 = vperm.slane %v468, 0
    %472 = vmatpush.msra.mxu0 %v467
    %473 = vmatpush.msra.mxu0 %v466
    %474 = vmatpush.msra.mxu0 %v465
    %475 = vmatpush.msra.mxu0 %v464
    %476 = vmatpush.msra.mxu0 %v463
    %477 = vmatpush.msra.mxu0 %v462
    %478 = vmatpush.msra.mxu0 %v461
    %479 = vmatpush.msra.mxu0 %v460
    %480 = vmatpush.msra.mxu0 %v459
    %481 = vmatpush.msra.mxu0 %v458
    %482 = vmatpush.msra.mxu0 %v457
    %483 = vmatpush.msra.mxu0 %v456
    %484 = vmatpush.msra.mxu0 %v455
    %485 = vmatpush.msra.mxu0 %v454
    %486 = vmatpush.msra.mxu0 %v453
    %487 = vmatpush.msra.mxu0 %v452
    %488 = vmatmul.f32.gmra.mxu0 %v420
    %v489 = vpop.f32.mrf.mxu0
    %v490 = vadd.f32 %v470, %v489
    %491 = vmatmul.f32.gmra.mxu0 %v421
    %v492 = vpop.f32.mrf.mxu0
    %v493 = vadd.f32 %v470, %v492
    %494 = vmatmul.f32.gmra.mxu0 %v422
    %v495 = vpop.f32.mrf.mxu0
    %v496 = vadd.f32 %v470, %v495
    %497 = vmatmul.f32.gmra.mxu0 %v423
    %v498 = vpop.f32.mrf.mxu0
    %v499 = vadd.f32 %v470, %v498
    %500 = vmatmul.f32.gmra.mxu0 %v424
    %v501 = vpop.f32.mrf.mxu0
    %v502 = vadd.f32 %v470, %v501
    %503 = vmatmul.f32.gmra.mxu0 %v425
    %v504 = vpop.f32.mrf.mxu0
    %v505 = vadd.f32 %v470, %v504
    %506 = vmatmul.f32.gmra.mxu0 %v426
    %v507 = vpop.f32.mrf.mxu0
    %v508 = vadd.f32 %v470, %v507
    %509 = vmatmul.f32.gmra.mxu0 %v427
    %v510 = vpop.f32.mrf.mxu0
    %v511 = vadd.f32 %v470, %v510
    %512 = vmatmul.f32.gmra.mxu0 %v428
    %v513 = vpop.f32.mrf.mxu0
    %v514 = vadd.f32 %v470, %v513
    %515 = vmatmul.f32.gmra.mxu0 %v429
    %v516 = vpop.f32.mrf.mxu0
    %v517 = vadd.f32 %v470, %v516
    %518 = vmatmul.f32.gmra.mxu0 %v430
    %v519 = vpop.f32.mrf.mxu0
    %v520 = vadd.f32 %v470, %v519
    %521 = vmatmul.f32.gmra.mxu0 %v431
    %v522 = vpop.f32.mrf.mxu0
    %v523 = vadd.f32 %v470, %v522
    %524 = vmatmul.f32.gmra.mxu0 %v432
    %v525 = vpop.f32.mrf.mxu0
    %v526 = vadd.f32 %v470, %v525
    %527 = vmatmul.f32.gmra.mxu0 %v433
    %v528 = vpop.f32.mrf.mxu0
    %v529 = vadd.f32 %v470, %v528
    %530 = vmatmul.f32.gmra.mxu0 %v434
    %v531 = vpop.f32.mrf.mxu0
    %v532 = vadd.f32 %v470, %v531
    %533 = vmatmul.f32.gmra.mxu0 %v435
    %v534 = vpop.f32.mrf.mxu0
    %v535 = vadd.f32 %v470, %v534
    %536 = vmatmul.f32.gmra.mxu0 %v436
    %v537 = vpop.f32.mrf.mxu0
    %v538 = vadd.f32 %v470, %v537
    %539 = vmatmul.f32.gmra.mxu0 %v437
    %v540 = vpop.f32.mrf.mxu0
    %v541 = vadd.f32 %v470, %v540
    %542 = vmatmul.f32.gmra.mxu0 %v438
    %v543 = vpop.f32.mrf.mxu0
    %v544 = vadd.f32 %v470, %v543
    %545 = vmatmul.f32.gmra.mxu0 %v439
    %v546 = vpop.f32.mrf.mxu0
    %v547 = vadd.f32 %v470, %v546
    %548 = vmatmul.f32.gmra.mxu0 %v440
    %v549 = vpop.f32.mrf.mxu0
    %v550 = vadd.f32 %v470, %v549
    %551 = vmatmul.f32.gmra.mxu0 %v441
    %v552 = vpop.f32.mrf.mxu0
    %v553 = vadd.f32 %v470, %v552
    %554 = vmatmul.f32.gmra.mxu0 %v442
    %v555 = vpop.f32.mrf.mxu0
    %v556 = vadd.f32 %v470, %v555
    %557 = vmatmul.f32.gmra.mxu0 %v443
    %v558 = vpop.f32.mrf.mxu0
    %v559 = vadd.f32 %v470, %v558
    %560 = vmatmul.f32.gmra.mxu0 %v444
    %v561 = vpop.f32.mrf.mxu0
    %v562 = vadd.f32 %v470, %v561
    %563 = vmatmul.f32.gmra.mxu0 %v445
    %v564 = vpop.f32.mrf.mxu0
    %v565 = vadd.f32 %v470, %v564
    %566 = vmatmul.f32.gmra.mxu0 %v446
    %v567 = vpop.f32.mrf.mxu0
    %v568 = vadd.f32 %v470, %v567
    %569 = vmatmul.f32.gmra.mxu0 %v447
    %v570 = vpop.f32.mrf.mxu0
    %v571 = vadd.f32 %v470, %v570
    %572 = vmatmul.f32.gmra.mxu0 %v448
    %v573 = vpop.f32.mrf.mxu0
    %v574 = vadd.f32 %v470, %v573
    %575 = vmatmul.f32.gmra.mxu0 %v449
    %v576 = vpop.f32.mrf.mxu0
    %v577 = vadd.f32 %v470, %v576
    %578 = vmatmul.f32.gmra.mxu0 %v450
    %v579 = vpop.f32.mrf.mxu0
    %v580 = vadd.f32 %v470, %v579
    %581 = vmatmul.f32.gmra.mxu0 %v451
    %v582 = vpop.f32.mrf.mxu0
    %v583 = vadd.f32 %v470, %v582
    %584 = vdwg.mxu0
    %v585 = vpack.c.bf16 %v490, %v490
    %v586 = vpack.c.bf16 %v493, %v493
    %v587 = vpack.c.bf16 %v496, %v496
    %v588 = vpack.c.bf16 %v499, %v499
    %v589 = vpack.c.bf16 %v502, %v502
    %v590 = vpack.c.bf16 %v505, %v505
    %v591 = vpack.c.bf16 %v508, %v508
    %v592 = vpack.c.bf16 %v511, %v511
    %v593 = vpack.c.bf16 %v514, %v514
    %v594 = vpack.c.bf16 %v517, %v517
    %v595 = vpack.c.bf16 %v520, %v520
    %v596 = vpack.c.bf16 %v523, %v523
    %v597 = vpack.c.bf16 %v526, %v526
    %v598 = vpack.c.bf16 %v529, %v529
    %v599 = vpack.c.bf16 %v532, %v532
    %v600 = vpack.c.bf16 %v535, %v535
    %v601 = vpack.c.bf16 %v538, %v538
    %v602 = vpack.c.bf16 %v541, %v541
    %v603 = vpack.c.bf16 %v544, %v544
    %v604 = vpack.c.bf16 %v547, %v547
    %v605 = vpack.c.bf16 %v550, %v550
    %v606 = vpack.c.bf16 %v553, %v553
    %v607 = vpack.c.bf16 %v556, %v556
    %v608 = vpack.c.bf16 %v559, %v559
    %v609 = vpack.c.bf16 %v562, %v562
    %v610 = vpack.c.bf16 %v565, %v565
    %v611 = vpack.c.bf16 %v568, %v568
    %v612 = vpack.c.bf16 %v571, %v571
    %v613 = vpack.c.bf16 %v574, %v574
    %v614 = vpack.c.bf16 %v577, %v577
    %v615 = vpack.c.bf16 %v580, %v580
    %v616 = vpack.c.bf16 %v583, %v583
    %617 = vst [vmem:[#allocation10] sm:$0xf] %v585
    %618 = vst [vmem:[#allocation10 + $0x4] sm:$0xf] %v586
    %619 = vst [vmem:[#allocation10 + $0x8] sm:$0xf] %v587
    %620 = vst [vmem:[#allocation10 + $0xc] sm:$0xf] %v588
    %621 = vst [vmem:[#allocation10 + $0x10] sm:$0xf] %v589
    %622 = vst [vmem:[#allocation10 + $0x14] sm:$0xf] %v590
    %623 = vst [vmem:[#allocation10 + $0x18] sm:$0xf] %v591
    %624 = vst [vmem:[#allocation10 + $0x1c] sm:$0xf] %v592
    %625 = vst [vmem:[#allocation10 + $0x20] sm:$0xf] %v593
    %626 = vst [vmem:[#allocation10 + $0x24] sm:$0xf] %v594
    %627 = vst [vmem:[#allocation10 + $0x28] sm:$0xf] %v595
    %628 = vst [vmem:[#allocation10 + $0x2c] sm:$0xf] %v596
    %629 = vst [vmem:[#allocation10 + $0x30] sm:$0xf] %v597
    %630 = vst [vmem:[#allocation10 + $0x34] sm:$0xf] %v598
    %631 = vst [vmem:[#allocation10 + $0x38] sm:$0xf] %v599
    %632 = vst [vmem:[#allocation10 + $0x3c] sm:$0xf] %v600
    %633 = vst [vmem:[#allocation10 + $0x40] sm:$0xf] %v601
    %634 = vst [vmem:[#allocation10 + $0x44] sm:$0xf] %v602
    %635 = vst [vmem:[#allocation10 + $0x48] sm:$0xf] %v603
    %636 = vst [vmem:[#allocation10 + $0x4c] sm:$0xf] %v604
    %637 = vst [vmem:[#allocation10 + $0x50] sm:$0xf] %v605
    %638 = vst [vmem:[#allocation10 + $0x54] sm:$0xf] %v606
    %639 = vst [vmem:[#allocation10 + $0x58] sm:$0xf] %v607
    %640 = vst [vmem:[#allocation10 + $0x5c] sm:$0xf] %v608
    %641 = vst [vmem:[#allocation10 + $0x60] sm:$0xf] %v609
    %642 = vst [vmem:[#allocation10 + $0x64] sm:$0xf] %v610
    %643 = vst [vmem:[#allocation10 + $0x68] sm:$0xf] %v611
    %644 = vst [vmem:[#allocation10 + $0x6c] sm:$0xf] %v612
    %645 = vst [vmem:[#allocation10 + $0x70] sm:$0xf] %v613
    %646 = vst [vmem:[#allocation10 + $0x74] sm:$0xf] %v614
    %647 = vst [vmem:[#allocation10 + $0x78] sm:$0xf] %v615
    %648 = vst [vmem:[#allocation10 + $0x7c] sm:$0xf] %v616
    // Predicated region
    $region46: #{tpu_custom_call.1} parent=1 // pred_check
      _
    $region47: #{tpu_custom_call.1} parent=1 // pred_check_branch
      %650 = sbr.rel (0) target = $region49
    $region48: #{tpu_custom_call.1} parent=1 // pred_region
      %652 = vsyncadd [#allocation4], 0
      %s653 = sshll.u32 [#allocation10], 4
      %s654 = int_to_ptr.vmem [resolvable:$true] %s653
      %s655 = sshll.u32 %s7, 4
      %s656 = int_to_ptr.hbm [resolvable:$true] %s655
      %661 = dma.vmem_to_hbm [thread:$0]  %s654, 2048, %s656, [#allocation4], 64, 64, 4
    $region49: #{tpu_custom_call.1} parent=1 // pred_fallthru
      _
    // Predicated region
    $region50: #{tpu_custom_call.1} parent=1 // pred_check
      _
    $region51: #{tpu_custom_call.1} parent=1 // pred_check_branch
      %663 = sbr.rel (0) target = $region53
    $region52: #{tpu_custom_call.1} parent=1 // pred_region
      %665 = dma.done [#allocation4], 2048
    $region53: #{tpu_custom_call.1} parent=1 // pred_fallthru
      _
    %666 = vsyncpa [#allocation3], 1
    %667 = vsyncpa [#allocation6], 1
    %668 = vsyncpa [#allocation9], 1
    %669 = vsyncpa [#allocation4], 1

</llo_original>
